<compile_context>
chip_gen: v5e
topology: v5e:2x2
jax: 0.10.0
libtpu: 0.0.40
codegen_flags: <defaults>
</compile_context>

<pallas_src>
import functools
import math

import jax
import jax.numpy as jnp
from jax import lax
from jax.experimental import pallas as pl
from jax.experimental.pallas import tpu as pltpu

EPS = 1e-8
LANE = 128
SUBLANE = 8
TM_CAP = 1024          # hard cap on token-tile rows (regalloc / diminishing returns)
GELU_APPROX_TANH = True  # tanh-approx GELU (EUP slot). Set False for exact erf (VALU polynomial).


def _round_up(x, m):
    return (x + m - 1) // m * m


# ---------------------------------------------------------------------------
# Kernel helpers
# ---------------------------------------------------------------------------
def _gelu(x):
    if GELU_APPROX_TANH:
        # tanh-approx GELU: transcendental goes to the (otherwise idle) EUP slot.
        c = math.sqrt(2.0 / math.pi)
        return 0.5 * x * (1.0 + jnp.tanh(c * (x + 0.044715 * x * x * x)))
    # nn.GELU() default (approximate='none'): 0.5 * x * (1 + erf(x / sqrt(2)))
    return 0.5 * x * (1.0 + lax.erf(x * (1.0 / math.sqrt(2.0))))


def _rms_inv(x, inv_d):
    # PyTorch RMSNorm: norm = ||x||_2 / sqrt(d);  out = scale * x / (norm + eps)
    # Padded lanes are zero, so sum is unaffected; inv_d uses the real D.
    ms = jnp.sum(x * x, axis=-1, keepdims=True) * inv_d
    return pl.reciprocal(jnp.sqrt(ms) + EPS, approx=True)  # EUP; eps stays outside sqrt


# ---------------------------------------------------------------------------
# Kernel: one (token tile, layer) grid step. Residual accumulator is VMEM-resident.
# ---------------------------------------------------------------------------
def _fused_mamba_kernel(x_ref, w1_ref, b1_ref, w2_ref, b2_ref, fscale_ref,
                        o_ref, acc_ref, *, inv_d):
    l = pl.program_id(1)

    @pl.when(l == 0)
    def _():
        acc_ref[...] = x_ref[...]                      # residual init (f32)

    x = acc_ref[...]
    # per-layer RMSNorm scale is folded into W1 rows at prep time
    normed = x * _rms_inv(x, inv_d)
    h = jnp.dot(normed.astype(jnp.bfloat16), w1_ref[...],
                preferred_element_type=jnp.float32) + b1_ref[...]
    h = _gelu(h)
    y = jnp.dot(h.astype(jnp.bfloat16), w2_ref[...],
                preferred_element_type=jnp.float32) + b2_ref[...]
    new_x = x + y
    acc_ref[...] = new_x

    @pl.when(l == pl.num_programs(1) - 1)
    def _():
        o_ref[...] = (fscale_ref[...] * new_x * _rms_inv(new_x, inv_d)).astype(o_ref.dtype)


# ---------------------------------------------------------------------------
# Weight preparation (hoisted out of the per-call path)
# ---------------------------------------------------------------------------
def prepare_params(params, final_scale):
    """Pad / stack / bf16-cast weights once. Linear weights are (in, out). The per-layer
    RMSNorm scale is folded into W1 rows: W1' = diag(scale) @ W1."""
    D, d_inner = params[0][1].shape
    Dp = _round_up(D, LANE)
    Dip = _round_up(d_inner, LANE)

    w1_l, b1_l, w2_l, b2_l = [], [], [], []
    for (scale, w1, b1, w2, b2) in params:
        w1_folded = scale.reshape(D, 1) * w1
        w1_l.append(jnp.pad(w1_folded, ((0, Dp - D), (0, Dip - d_inner))).astype(jnp.bfloat16))
        b1_l.append(jnp.pad(b1.reshape(1, d_inner), ((0, 0), (0, Dip - d_inner))))
        w2_l.append(jnp.pad(w2, ((0, Dip - d_inner), (0, Dp - D))).astype(jnp.bfloat16))
        b2_l.append(jnp.pad(b2.reshape(1, D), ((0, 0), (0, Dp - D))))

    return dict(
        w1s=jnp.stack(w1_l),                                        # (L, Dp, Dip) bf16
        b1s=jnp.stack(b1_l),                                        # (L, 1, Dip)  f32
        w2s=jnp.stack(w2_l),                                        # (L, Dip, Dp) bf16
        b2s=jnp.stack(b2_l),                                        # (L, 1, Dp)   f32
        fscale=jnp.pad(final_scale.reshape(1, D), ((0, 0), (0, Dp - D))),  # (1, Dp) f32
        d_model=D, d_inner=d_inner, n_layer=len(params),
    )


def _vmem_limit_bytes():
    """Generation-aware VMEM budget: physical capacity minus headroom for compiler scratch."""
    try:
        cap = int(pltpu.get_tpu_info().vmem_capacity_bytes)
    except Exception:
        cap = 64 * 1024 * 1024
    return int(max(32 * 1024 * 1024, cap - 8 * 1024 * 1024))


# ---------------------------------------------------------------------------
# Wrapper
# ---------------------------------------------------------------------------
def mamba_forward(x, prepared):
    """x: (B, S, d_model) -> (B, S, d_model), using weights prepared by prepare_params()."""
    B, S, D = x.shape
    assert D == prepared["d_model"]
    n_layer = prepared["n_layer"]
    Dp = prepared["w1s"].shape[1]
    Dip = prepared["w1s"].shape[2]
    T = B * S
    inv_d = 1.0 / D

    vmem_limit = _vmem_limit_bytes()

    # Streamed per-layer weights: 2 pipeline buffers each for W1/W2 (bf16) + biases + final scale.
    weight_bytes = 2 * (Dp * Dip * 2) * 2
    bias_bytes = 2 * (Dip + 2 * Dp) * 4
    # Per token row: x in (2 bufs) + out (2 bufs) + acc scratch (Dp f32) + matmul/GELU temps (Dip f32).
    per_row_bytes = 5 * Dp * 4 + 4 * Dip * 4
    budget = vmem_limit - weight_bytes - bias_bytes - (4 << 20)
    rows = budget // per_row_bytes if budget > 0 else SUBLANE
    tm_budget = max(SUBLANE, min(TM_CAP, rows // SUBLANE * SUBLANE))

    tm = min(tm_budget, _round_up(T, SUBLANE))
    # Give both v7x TensorCores work on small inputs (parallel token axis needs >= 2 tiles).
    if T > SUBLANE and _round_up(T, tm) // tm < 2:
        tm = _round_up((T + 1) // 2, SUBLANE)
    T_pad = _round_up(T, tm)

    x_pad = jnp.pad(x.reshape(T, D).astype(jnp.float32),
                    ((0, T_pad - T), (0, Dp - D)))

    out = pl.pallas_call(
        functools.partial(_fused_mamba_kernel, inv_d=inv_d),
        out_shape=jax.ShapeDtypeStruct((T_pad, Dp), jnp.float32),
        grid=(T_pad // tm, n_layer),
        in_specs=[
            pl.BlockSpec((tm, Dp), lambda i, l: (i, 0)),         # token tile (fetched once per i)
            pl.BlockSpec((None, Dp, Dip), lambda i, l: (l, 0, 0)),  # W1: streamed per layer
            pl.BlockSpec((None, 1, Dip), lambda i, l: (l, 0, 0)),   # b1
            pl.BlockSpec((None, Dip, Dp), lambda i, l: (l, 0, 0)),  # W2: streamed per layer
            pl.BlockSpec((None, 1, Dp), lambda i, l: (l, 0, 0)),    # b2
            pl.BlockSpec((1, Dp), lambda i, l: (0, 0)),             # final RMSNorm scale
        ],
        out_specs=pl.BlockSpec((tm, Dp), lambda i, l: (i, 0)),      # written at l == last
        scratch_shapes=[pltpu.VMEM((tm, Dp), jnp.float32)],         # residual accumulator
        input_output_aliases={0: 0},                                # x_pad is dead after the call
        compiler_params=pltpu.CompilerParams(
            dimension_semantics=("parallel", "arbitrary"),
            vmem_limit_bytes=vmem_limit,
        ),
    )(x_pad, prepared["w1s"], prepared["b1s"], prepared["w2s"],
      prepared["b2s"], prepared["fscale"])

    return out[:T, :D].reshape(B, S, D)


# ---------------------------------------------------------------------------
# Parameters & reference
# ---------------------------------------------------------------------------
def init_params(key, d_model, d_inner, n_layer):
    """Deterministic synthetic parameters (shapes match the PyTorch module; Linear weights
    stored transposed to (in, out))."""
    params = []
    for _ in range(n_layer):
        key, k1, k2, k3, k4 = jax.random.split(key, 5)
        w1 = jax.random.normal(k1, (d_model, d_inner), jnp.float32) * 0.02
        b1 = jax.random.normal(k2, (1, d_inner), jnp.float32) * 0.02
        w2 = jax.random.normal(k3, (d_inner, d_model), jnp.float32) * 0.02
        b2 = jax.random.normal(k4, (1, d_model), jnp.float32) * 0.02
        scale = jnp.ones((1, d_model), jnp.float32)
        params.append((scale, w1, b1, w2, b2))
    final_scale = jnp.ones((1, d_model), jnp.float32)
    return params, final_scale


def _reference_forward(x, params, final_scale):
    """Plain-JAX f32 reference mirroring the PyTorch semantics (exact-erf GELU)."""
    def rms(v, s):
        n = jnp.linalg.norm(v, axis=-1, keepdims=True) / math.sqrt(v.shape[-1])
        return s * v / (n + EPS)
    y = x
    for (scale, w1, b1, w2, b2) in params:
        res = y
        h = rms(y, scale[0])
        h = h @ w1 + b1[0]
        h = 0.5 * h * (1.0 + lax.erf(h / math.sqrt(2.0)))
        h = h @ w2 + b2[0]
        y = h + res
    return rms(y, final_scale[0])


if __name__ == "__main__":
    # Small shapes consistent with ModelArgs(d_model=32, n_layer=2) -> d_inner = 2 * 32 = 64
    d_model, n_layer = 32, 2
    d_inner = 2 * d_model
    B, S = 2, 8

    key = jax.random.PRNGKey(0)
    key, kx = jax.random.split(key)
    x = jax.random.normal(kx, (B, S, d_model), jnp.float32)

    params, final_scale = init_params(key, d_model, d_inner, n_layer)
    prepared = prepare_params(params, final_scale)   # hoisted weight prep (do once)

    out = mamba_forward(x, prepared)
    out = jax.block_until_ready(out)

    ref = _reference_forward(x, params, final_scale)
    assert out.shape == (B, S, d_model)
    # bf16 MXU operands + tanh-approx GELU + approx EUP reciprocal -> modest tolerance vs f32 ref.
    assert jnp.allclose(out, ref, atol=2e-2, rtol=2e-2), "mismatch vs reference"

    print("KERNEL_OK")
</pallas_src>

<mosaic_0001>
module attributes {stable_mosaic.version = 11 : i64} {
  func.func @_fused_mamba_kernel(%arg0: i32, %arg1: i32, %arg2: memref<8x128xf32, #tpu.memory_space<vmem>>, %arg3: memref<1x128x128xbf16, #tpu.memory_space<vmem>>, %arg4: memref<1x1x128xf32, #tpu.memory_space<vmem>>, %arg5: memref<1x128x128xbf16, #tpu.memory_space<vmem>>, %arg6: memref<1x1x128xf32, #tpu.memory_space<vmem>>, %arg7: memref<1x128xf32, #tpu.memory_space<vmem>>, %arg8: memref<8x128xf32, #tpu.memory_space<vmem>>, %arg9: memref<8x128xf32, #tpu.memory_space<vmem>>) attributes {dimension_semantics = [#tpu.dimension_semantics<parallel>, #tpu.dimension_semantics<arbitrary>], iteration_bounds = array<i64: 2, 2>, scalar_prefetch = 0 : i64, scratch_operands = 1 : i64, tpu.core_type = #tpu.core_type<tc>, window_params = [{transform_indices = @transform_0, window_bounds = array<i64: 8, 128>}, {transform_indices = @transform_1, window_bounds = array<i64: 1, 128, 128>}, {transform_indices = @transform_2, window_bounds = array<i64: 1, 1, 128>}, {transform_indices = @transform_3, window_bounds = array<i64: 1, 128, 128>}, {transform_indices = @transform_4, window_bounds = array<i64: 1, 1, 128>}, {pipeline_mode = #tpu.pipeline_mode<synchronous>, transform_indices = @transform_5, window_bounds = array<i64: 1, 128>}, {transform_indices = @transform_6, window_bounds = array<i64: 8, 128>}]} {
    %c0_i32 = arith.constant 0 : i32
    %0 = arith.cmpi eq, %arg1, %c0_i32 : i32
    %1 = arith.extui %0 : i1 to i32
    %c0_i32_0 = arith.constant 0 : i32
    %2 = arith.cmpi ne, %1, %c0_i32_0 : i32
    scf.if %2 {
      %c0_25 = arith.constant 0 : index
      %c0_26 = arith.constant 0 : index
      %49 = vector.load %arg2[%c0_25, %c0_26] : memref<8x128xf32, #tpu.memory_space<vmem>>, vector<8x128xf32>
      %c0_27 = arith.constant 0 : index
      %c0_28 = arith.constant 0 : index
      %50 = vector.load %arg9[%c0_27, %c0_28] : memref<8x128xf32, #tpu.memory_space<vmem>>, vector<8x128xf32>
      tpu.vector_store %arg9[%c0_27, %c0_28], %49 {strides = array<i32>} : memref<8x128xf32, #tpu.memory_space<vmem>>, vector<8x128xf32>,
    } else {
    }
    %c0 = arith.constant 0 : index
    %c0_1 = arith.constant 0 : index
    %3 = vector.load %arg9[%c0, %c0_1] : memref<8x128xf32, #tpu.memory_space<vmem>>, vector<8x128xf32>
    %4 = arith.mulf %3, %3 : vector<8x128xf32>
    %cst = arith.constant dense<0.000000e+00> : vector<8xf32>
    %5 = vector.multi_reduction <add>, %4, %cst [1] : vector<8x128xf32> to vector<8xf32>
    %6 = vector.shape_cast %5 : vector<8xf32> to vector<8x1xf32>
    %cst_2 = arith.constant 3.125000e-02 : f32
    %7 = vector.broadcast %cst_2 : f32 to vector<8x1xf32>
    %8 = arith.mulf %6, %7 : vector<8x1xf32>
    %9 = math.sqrt %8 : vector<8x1xf32>
    %cst_3 = arith.constant 9.99999993E-9 : f32
    %10 = vector.broadcast %cst_3 : f32 to vector<8x1xf32>
    %11 = arith.addf %9, %10 : vector<8x1xf32>
    %12 = tpu.reciprocal %11 {approx = true} : vector<8x1xf32> -> vector<8x1xf32>
    %13 = vector.broadcast %12 : vector<8x1xf32> to vector<8x128xf32>
    %14 = arith.mulf %3, %13 : vector<8x128xf32>
    %15 = arith.truncf %14 : vector<8x128xf32> to vector<8x128xbf16>
    %c0_4 = arith.constant 0 : index
    %c0_5 = arith.constant 0 : index
    %c0_6 = arith.constant 0 : index
    %16 = vector.load %arg3[%c0_4, %c0_5, %c0_6] : memref<1x128x128xbf16, #tpu.memory_space<vmem>>, vector<1x128x128xbf16>
    %17 = vector.shape_cast %16 : vector<1x128x128xbf16> to vector<128x128xbf16>
    %cst_7 = arith.constant dense<0.000000e+00> : vector<8x128xf32>
    %18 = tpu.matmul %15, %17, %cst_7 {dimension_numbers = #tpu.dot_dimension_numbers<[1], [0], [0], [1], [0, 0, 1, 1], [], []>} : vector<8x128xbf16>, vector<128x128xbf16>, vector<8x128xf32> -> vector<8x128xf32>
    %c0_8 = arith.constant 0 : index
    %c0_9 = arith.constant 0 : index
    %c0_10 = arith.constant 0 : index
    %19 = vector.load %arg4[%c0_8, %c0_9, %c0_10] : memref<1x1x128xf32, #tpu.memory_space<vmem>>, vector<1x1x128xf32>
    %20 = vector.shape_cast %19 : vector<1x1x128xf32> to vector<1x128xf32>
    %21 = vector.broadcast %20 : vector<1x128xf32> to vector<8x128xf32>
    %22 = arith.addf %18, %21 : vector<8x128xf32>
    %cst_11 = arith.constant 5.000000e-01 : f32
    %23 = vector.broadcast %cst_11 : f32 to vector<8x128xf32>
    %24 = arith.mulf %23, %22 : vector<8x128xf32>
    %cst_12 = arith.constant 4.471500e-02 : f32
    %25 = vector.broadcast %cst_12 : f32 to vector<8x128xf32>
    %26 = arith.mulf %25, %22 : vector<8x128xf32>
    %27 = arith.mulf %26, %22 : vector<8x128xf32>
    %28 = arith.mulf %27, %22 : vector<8x128xf32>
    %29 = arith.addf %22, %28 : vector<8x128xf32>
    %cst_13 = arith.constant 0.797884583 : f32
    %30 = vector.broadcast %cst_13 : f32 to vector<8x128xf32>
    %31 = arith.mulf %30, %29 : vector<8x128xf32>
    %32 = math.tanh %31 : vector<8x128xf32>
    %cst_14 = arith.constant 1.000000e+00 : f32
    %33 = vector.broadcast %cst_14 : f32 to vector<8x128xf32>
    %34 = arith.addf %33, %32 : vector<8x128xf32>
    %35 = arith.mulf %24, %34 : vector<8x128xf32>
    %36 = arith.truncf %35 : vector<8x128xf32> to vector<8x128xbf16>
    %c0_15 = arith.constant 0 : index
    %c0_16 = arith.constant 0 : index
    %c0_17 = arith.constant 0 : index
    %37 = vector.load %arg5[%c0_15, %c0_16, %c0_17] : memref<1x128x128xbf16, #tpu.memory_space<vmem>>, vector<1x128x128xbf16>
    %38 = vector.shape_cast %37 : vector<1x128x128xbf16> to vector<128x128xbf16>
    %cst_18 = arith.constant dense<0.000000e+00> : vector<8x128xf32>
    %39 = tpu.matmul %36, %38, %cst_18 {dimension_numbers = #tpu.dot_dimension_numbers<[1], [0], [0], [1], [0, 0, 1, 1], [], []>} : vector<8x128xbf16>, vector<128x128xbf16>, vector<8x128xf32> -> vector<8x128xf32>
    %c0_19 = arith.constant 0 : index
    %c0_20 = arith.constant 0 : index
    %c0_21 = arith.constant 0 : index
    %40 = vector.load %arg6[%c0_19, %c0_20, %c0_21] : memref<1x1x128xf32, #tpu.memory_space<vmem>>, vector<1x1x128xf32>
    %41 = vector.shape_cast %40 : vector<1x1x128xf32> to vector<1x128xf32>
    %42 = vector.broadcast %41 : vector<1x128xf32> to vector<8x128xf32>
    %43 = arith.addf %39, %42 : vector<8x128xf32>
    %44 = arith.addf %3, %43 : vector<8x128xf32>
    %c0_22 = arith.constant 0 : index
    %c0_23 = arith.constant 0 : index
    %45 = vector.load %arg9[%c0_22, %c0_23] : memref<8x128xf32, #tpu.memory_space<vmem>>, vector<8x128xf32>
    tpu.vector_store %arg9[%c0_22, %c0_23], %44 {strides = array<i32>} : memref<8x128xf32, #tpu.memory_space<vmem>>, vector<8x128xf32>,
    %c1_i32 = arith.constant 1 : i32
    %46 = arith.cmpi eq, %arg1, %c1_i32 : i32
    %47 = arith.extui %46 : i1 to i32
    %c0_i32_24 = arith.constant 0 : i32
    %48 = arith.cmpi ne, %47, %c0_i32_24 : i32
    scf.if %48 {
      %c0_25 = arith.constant 0 : index
      %c0_26 = arith.constant 0 : index
      %49 = vector.load %arg7[%c0_25, %c0_26] : memref<1x128xf32, #tpu.memory_space<vmem>>, vector<1x128xf32>
      %50 = vector.broadcast %49 : vector<1x128xf32> to vector<8x128xf32>
      %51 = arith.mulf %50, %44 : vector<8x128xf32>
      %52 = arith.mulf %44, %44 : vector<8x128xf32>
      %cst_27 = arith.constant dense<0.000000e+00> : vector<8xf32>
      %53 = vector.multi_reduction <add>, %52, %cst_27 [1] : vector<8x128xf32> to vector<8xf32>
      %54 = vector.shape_cast %53 : vector<8xf32> to vector<8x1xf32>
      %cst_28 = arith.constant 3.125000e-02 : f32
      %55 = vector.broadcast %cst_28 : f32 to vector<8x1xf32>
      %56 = arith.mulf %54, %55 : vector<8x1xf32>
      %57 = math.sqrt %56 : vector<8x1xf32>
      %cst_29 = arith.constant 9.99999993E-9 : f32
      %58 = vector.broadcast %cst_29 : f32 to vector<8x1xf32>
      %59 = arith.addf %57, %58 : vector<8x1xf32>
      %60 = tpu.reciprocal %59 {approx = true} : vector<8x1xf32> -> vector<8x1xf32>
      %61 = vector.broadcast %60 : vector<8x1xf32> to vector<8x128xf32>
      %62 = arith.mulf %51, %61 : vector<8x128xf32>
      %c0_30 = arith.constant 0 : index
      %c0_31 = arith.constant 0 : index
      %63 = vector.load %arg8[%c0_30, %c0_31] : memref<8x128xf32, #tpu.memory_space<vmem>>, vector<8x128xf32>
      tpu.vector_store %arg8[%c0_30, %c0_31], %62 {strides = array<i32>} : memref<8x128xf32, #tpu.memory_space<vmem>>, vector<8x128xf32>,
    } else {
    }
    return
  }
  func.func @transform_0(%arg0: i32, %arg1: i32) -> (i32, i32) {
    %c0_i32 = arith.constant 0 : i32
    %c0_i32_0 = arith.constant 0 : i32
    return %arg0, %c0_i32 : i32, i32
  }
  func.func @transform_1(%arg0: i32, %arg1: i32) -> (i32, i32, i32) {
    %c0_i32 = arith.constant 0 : i32
    %c0_i32_0 = arith.constant 0 : i32
    %c0_i32_1 = arith.constant 0 : i32
    return %arg1, %c0_i32, %c0_i32_0 : i32, i32, i32
  }
  func.func @transform_2(%arg0: i32, %arg1: i32) -> (i32, i32, i32) {
    %c0_i32 = arith.constant 0 : i32
    %c0_i32_0 = arith.constant 0 : i32
    %c0_i32_1 = arith.constant 0 : i32
    return %arg1, %c0_i32, %c0_i32_0 : i32, i32, i32
  }
  func.func @transform_3(%arg0: i32, %arg1: i32) -> (i32, i32, i32) {
    %c0_i32 = arith.constant 0 : i32
    %c0_i32_0 = arith.constant 0 : i32
    %c0_i32_1 = arith.constant 0 : i32
    return %arg1, %c0_i32, %c0_i32_0 : i32, i32, i32
  }
  func.func @transform_4(%arg0: i32, %arg1: i32) -> (i32, i32, i32) {
    %c0_i32 = arith.constant 0 : i32
    %c0_i32_0 = arith.constant 0 : i32
    %c0_i32_1 = arith.constant 0 : i32
    return %arg1, %c0_i32, %c0_i32_0 : i32, i32, i32
  }
  func.func @transform_5(%arg0: i32, %arg1: i32) -> (i32, i32) {
    %c0_i32 = arith.constant 0 : i32
    %c0_i32_0 = arith.constant 0 : i32
    %c0_i32_1 = arith.constant 0 : i32
    return %c0_i32, %c0_i32_0 : i32, i32
  }
  func.func @transform_6(%arg0: i32, %arg1: i32) -> (i32, i32) {
    %c0_i32 = arith.constant 0 : i32
    %c0_i32_0 = arith.constant 0 : i32
    return %arg0, %c0_i32 : i32, i32
  }
}

</mosaic_0001>

<llo_original>
// kernel: tpu_custom_call.1
$region0: #{tpu_custom_call.1}
  #allocation0 [shape = 'u32[]', space=smem, size = 0x4, offset = 0x4, fixed_abs, tag = 'smem constant byte address 0x4 - core index']
  #allocation1 [shape = 'u32[72,128]{1,0:T(1,128)}', space=vmem, size = 0x9000, scoped, tag = 'internal scratch']
  #allocation2 [shape = 'f32[8,128]{1,0:T(8,128)}', space=vmem, size = 0x1000, scoped, tag = 'scratch operand']
  %s0 = inlined_call_operand.hbm [shape: f32[16,128], index: 0, kind: input, shape index: {}, may-alias: {0,6}]
  %s1 = inlined_call_operand.hbm [shape: bf16[2,128,128], index: 1, kind: input, shape index: {}]
  %s2 = inlined_call_operand.vmem [shape: f32[2,1,128], index: 2, kind: input, shape index: {}]
  %s3 = inlined_call_operand.hbm [shape: bf16[2,128,128], index: 3, kind: input, shape index: {}]
  %s4 = inlined_call_operand.vmem [shape: f32[2,1,128], index: 4, kind: input, shape index: {}]
  %s5 = inlined_call_operand.vmem [shape: f32[1,128], index: 5, kind: input, shape index: {}]
  %s6 = inlined_call_operand.hbm [shape: f32[16,128], index: 6, kind: output, shape index: {}, may-alias: {0,6}]
  %s7 = sld [smem:[#allocation0]]
  $region77: #{tpu_custom_call.1} parent=0
    _
  %s9 = ssub.s32 1, %s7
  %s10 = scalar_select 0, %s9, %s7
  $region1: #{tpu_custom_call.1} parent=0
    #allocation3 [shape = 'u8[8192]{0}', space=vmem, size = 0x2000, scoped, tag = 'input window, operand 0']
    #allocation4 [shape = 's32[2]{0}', space=sflag, size = 0x8, scoped, tag = 'scoped memory for tpu_custom_call.1']
    #allocation5 [shape = 's32[2]{0}', space=sflag, size = 0x8, scoped, tag = 'scoped memory for tpu_custom_call.1']
    #allocation6 [shape = 'u8[65536]{0}', space=vmem, size = 0x10000, scoped, tag = 'input window, operand 1']
    #allocation7 [shape = 's32[2]{0}', space=sflag, size = 0x8, scoped, tag = 'scoped memory for tpu_custom_call.1']
    #allocation8 [shape = 'u8[65536]{0}', space=vmem, size = 0x10000, scoped, tag = 'input window, operand 3']
    #allocation9 [shape = 'u8[8192]{0}', space=vmem, size = 0x2000, scoped, tag = 'output window, operand 0']
    %11 = vsyncpa [#allocation4], 0
    %s12 = scalar_lea.sflag [#allocation4], 1
    %13 = vsyncpa %s12, 0
    %14 = vsyncpa [#allocation7], 0
    %s15 = scalar_lea.sflag [#allocation7], 1
    %16 = vsyncpa %s15, 0
    %17 = vsyncpa [#allocation5], 0
    %s18 = scalar_lea.sflag [#allocation5], 1
    %19 = vsyncpa %s18, 0
    loop: start=0, step=1, limit=6
    $region2: #{tpu_custom_call.1} parent=1 // loop_pre_header
      _
    $region3: #{tpu_custom_call.1} parent=1 // loop_header
      %s21 = sphi 0, %s25
      %p22 = scmp.ge.s32.totalorder %s21, 6
      %s28 = sphi 0, %s40
      %s29 = sphi 0, %s36
      %s30 = sphi 0, %s28
      %s31 = sphi 0, %s29
      %s32 = sphi 0, %s30
      %s33 = sphi 0, %s31
      %s43 = sphi 0, %s45
      %s46 = sphi 0, %s43
      %s47 = sphi 0, %s46
      %s63 = sphi 0, %s47
      %s69 = sphi 0, %s71
      %s72 = sphi 0, %s69
      %s73 = sphi 0, %s72
      %s89 = sphi 0, %s73
      %s95 = sphi 0, %s97
      %s98 = sphi 0, %s95
      %s99 = sphi 0, %s98
      %s115 = sphi 0, %s99
      %s121 = sphi 0, %s123
      %s124 = sphi 0, %s121
      %s125 = sphi 0, %s124
      %s141 = sphi 0, %s125
      %s147 = sphi 0, %s149
      %s150 = sphi 0, %s147
      %s151 = sphi 0, %s150
      %s167 = sphi 0, %s151
      %s171 = sphi 0, %s171
      %s173 = sphi 0, %s171
      %s174 = sphi 0, %s173
      %s188 = sphi 0, %s174
      %s194 = sphi 0, %s196
      %s197 = sphi 0, %s194
      %s198 = sphi 0, %s197
      %s214 = sphi 0, %s198
    $region4: #{tpu_custom_call.1} parent=1 // loop_header_branch
      %24 = sbr.rel (%p22) target = $region8
    $region5: #{tpu_custom_call.1} parent=1 // loop_body
      %s26 = ssub.s32 %s21, 1
      %s27 = ssub.s32 %s21, 2
      %s34 = sadd.s32 1, %s29
      %p35 = scmp.ge.s32.totalorder %s34, 2
      %s36 = scalar_select %p35, 0, %s34
      %s37 = sadd.s32 1, %s28
      %s38 = scalar_select %p35, %s37, %s28
      %p39 = scmp.ge.s32.totalorder %s38, 2
      %s40 = scalar_select %p39, 0, %s38
      %s41 = ssub.s32 %s28, %s40
      %p42 = scmp.eq.s32.totalorder %s41, 0
      %s44 = sadd.s32 %s43, 1
      %s45 = scalar_select %p42, %s43, %s44
      %p48 = pneg %p42
      %p49 = scmp.eq.s32.totalorder %s21, 3
      %p50 = por %p48, %p49
      %p51 = scmp.ne.s32.totalorder %s43, %s46
      %p52 = scmp.eq.s32.totalorder %s21, 0
      %p53 = por %p51, %p52
      %p54 = scmp.ne.s32.totalorder %s43, %s46
      %p55 = scmp.eq.s32.totalorder %s26, 3
      %p56 = por %p54, %p55
      %p57 = scmp.ne.s32.totalorder %s46, %s47
      %p58 = scmp.eq.s32.totalorder %s26, 0
      %p59 = por %p57, %p58
      %p60 = scmp.ne.s32.totalorder %s46, %s47
      %p61 = scmp.eq.s32.totalorder %s27, 3
      %p62 = por %p60, %p61
      %p64 = scmp.ne.s32.totalorder %s47, %s63
      %p65 = scmp.eq.s32.totalorder %s27, 0
      %p66 = por %p64, %p65
      %s67 = ssub.s32 %s29, %s36
      %p68 = scmp.eq.s32.totalorder %s67, 0
      %s70 = sadd.s32 %s69, 1
      %s71 = scalar_select %p68, %s69, %s70
      %p74 = pneg %p68
      %p75 = scmp.eq.s32.totalorder %s21, 3
      %p76 = por %p74, %p75
      %p77 = scmp.ne.s32.totalorder %s69, %s72
      %p78 = scmp.eq.s32.totalorder %s21, 0
      %p79 = por %p77, %p78
      %p80 = scmp.ne.s32.totalorder %s69, %s72
      %p81 = scmp.eq.s32.totalorder %s26, 3
      %p82 = por %p80, %p81
      %p83 = scmp.ne.s32.totalorder %s72, %s73
      %p84 = scmp.eq.s32.totalorder %s26, 0
      %p85 = por %p83, %p84
      %p86 = scmp.ne.s32.totalorder %s72, %s73
      %p87 = scmp.eq.s32.totalorder %s27, 3
      %p88 = por %p86, %p87
      %p90 = scmp.ne.s32.totalorder %s73, %s89
      %p91 = scmp.eq.s32.totalorder %s27, 0
      %p92 = por %p90, %p91
      %s93 = ssub.s32 %s29, %s36
      %p94 = scmp.eq.s32.totalorder %s93, 0
      %s96 = sadd.s32 %s95, 1
      %s97 = scalar_select %p94, %s95, %s96
      %p100 = pneg %p94
      %p101 = scmp.eq.s32.totalorder %s21, 3
      %p102 = por %p100, %p101
      %p103 = scmp.ne.s32.totalorder %s95, %s98
      %p104 = scmp.eq.s32.totalorder %s21, 0
      %p105 = por %p103, %p104
      %p106 = scmp.ne.s32.totalorder %s95, %s98
      %p107 = scmp.eq.s32.totalorder %s26, 3
      %p108 = por %p106, %p107
      %p109 = scmp.ne.s32.totalorder %s98, %s99
      %p110 = scmp.eq.s32.totalorder %s26, 0
      %p111 = por %p109, %p110
      %p112 = scmp.ne.s32.totalorder %s98, %s99
      %p113 = scmp.eq.s32.totalorder %s27, 3
      %p114 = por %p112, %p113
      %p116 = scmp.ne.s32.totalorder %s99, %s115
      %p117 = scmp.eq.s32.totalorder %s27, 0
      %p118 = por %p116, %p117
      %s119 = ssub.s32 %s29, %s36
      %p120 = scmp.eq.s32.totalorder %s119, 0
      %s122 = sadd.s32 %s121, 1
      %s123 = scalar_select %p120, %s121, %s122
      %p126 = pneg %p120
      %p127 = scmp.eq.s32.totalorder %s21, 3
      %p128 = por %p126, %p127
      %p129 = scmp.ne.s32.totalorder %s121, %s124
      %p130 = scmp.eq.s32.totalorder %s21, 0
      %p131 = por %p129, %p130
      %p132 = scmp.ne.s32.totalorder %s121, %s124
      %p133 = scmp.eq.s32.totalorder %s26, 3
      %p134 = por %p132, %p133
      %p135 = scmp.ne.s32.totalorder %s124, %s125
      %p136 = scmp.eq.s32.totalorder %s26, 0
      %p137 = por %p135, %p136
      %p138 = scmp.ne.s32.totalorder %s124, %s125
      %p139 = scmp.eq.s32.totalorder %s27, 3
      %p140 = por %p138, %p139
      %p142 = scmp.ne.s32.totalorder %s125, %s141
      %p143 = scmp.eq.s32.totalorder %s27, 0
      %p144 = por %p142, %p143
      %s145 = ssub.s32 %s29, %s36
      %p146 = scmp.eq.s32.totalorder %s145, 0
      %s148 = sadd.s32 %s147, 1
      %s149 = scalar_select %p146, %s147, %s148
      %p152 = pneg %p146
      %p153 = scmp.eq.s32.totalorder %s21, 3
      %p154 = por %p152, %p153
      %p155 = scmp.ne.s32.totalorder %s147, %s150
      %p156 = scmp.eq.s32.totalorder %s21, 0
      %p157 = por %p155, %p156
      %p158 = scmp.ne.s32.totalorder %s147, %s150
      %p159 = scmp.eq.s32.totalorder %s26, 3
      %p160 = por %p158, %p159
      %p161 = scmp.ne.s32.totalorder %s150, %s151
      %p162 = scmp.eq.s32.totalorder %s26, 0
      %p163 = por %p161, %p162
      %p164 = scmp.ne.s32.totalorder %s150, %s151
      %p165 = scmp.eq.s32.totalorder %s27, 3
      %p166 = por %p164, %p165
      %p168 = scmp.ne.s32.totalorder %s151, %s167
      %p169 = scmp.eq.s32.totalorder %s27, 0
      %p170 = por %p168, %p169
      %s172 = sadd.s32 %s171, 1
      %p175 = scmp.eq.s32.totalorder %s21, 3
      %p176 = scmp.ne.s32.totalorder %s171, %s173
      %p177 = scmp.eq.s32.totalorder %s21, 0
      %p178 = por %p176, %p177
      %p179 = scmp.ne.s32.totalorder %s171, %s173
      %p180 = scmp.eq.s32.totalorder %s26, 3
      %p181 = por %p179, %p180
      %p182 = scmp.ne.s32.totalorder %s173, %s174
      %p183 = scmp.eq.s32.totalorder %s26, 0
      %p184 = por %p182, %p183
      %p185 = scmp.ne.s32.totalorder %s173, %s174
      %p186 = scmp.eq.s32.totalorder %s27, 3
      %p187 = por %p185, %p186
      %p189 = scmp.ne.s32.totalorder %s174, %s188
      %p190 = scmp.eq.s32.totalorder %s27, 0
      %p191 = por %p189, %p190
      %s192 = ssub.s32 %s28, %s40
      %p193 = scmp.eq.s32.totalorder %s192, 0
      %s195 = sadd.s32 %s194, 1
      %s196 = scalar_select %p193, %s194, %s195
      %p199 = pneg %p193
      %p200 = scmp.eq.s32.totalorder %s21, 3
      %p201 = por %p199, %p200
      %p202 = scmp.ne.s32.totalorder %s194, %s197
      %p203 = scmp.eq.s32.totalorder %s21, 0
      %p204 = por %p202, %p203
      %p205 = scmp.ne.s32.totalorder %s194, %s197
      %p206 = scmp.eq.s32.totalorder %s26, 3
      %p207 = por %p205, %p206
      %p208 = scmp.ne.s32.totalorder %s197, %s198
      %p209 = scmp.eq.s32.totalorder %s26, 0
      %p210 = por %p208, %p209
      %p211 = scmp.ne.s32.totalorder %s197, %s198
      %p212 = scmp.eq.s32.totalorder %s27, 3
      %p213 = por %p211, %p212
      %p215 = scmp.ne.s32.totalorder %s198, %s214
      %p216 = scmp.eq.s32.totalorder %s27, 0
      %p217 = por %p215, %p216
      %p218 = scmp.le.s32.totalorder 1, %s21
      %p219 = scmp.lt.s32.totalorder %s21, 5
      %p220 = pnand %p218, %p219
      %p221 = pneg %p220
      // Predicated region
      $region9: #{tpu_custom_call.1} parent=5 // pred_check
        _
      $region10: #{tpu_custom_call.1} parent=5 // pred_check_branch
        %223 = sbr.rel (%p220) target = $region12
      $region11: #{tpu_custom_call.1} parent=5 // pred_region
        %s224 = ssub.s32 %s21, 1
        // Predicated region
        $region13: #{tpu_custom_call.1} parent=11 // pred_check
          %p225 = pneg %p184
        $region14: #{tpu_custom_call.1} parent=11 // pred_check_branch
          %227 = sbr.rel (%p225) target = $region16
        $region15: #{tpu_custom_call.1} parent=11 // pred_region
          _
        $region16: #{tpu_custom_call.1} parent=11 // pred_fallthru
          _
      $region12: #{tpu_custom_call.1} parent=5 // pred_fallthru
        _
      %p228 = scmp.lt.s32.totalorder %s21, 4
      // Predicated region
      $region17: #{tpu_custom_call.1} parent=5 // pred_check
        %p229 = pneg %p228
      $region18: #{tpu_custom_call.1} parent=5 // pred_check_branch
        %231 = sbr.rel (%p229) target = $region20
      $region19: #{tpu_custom_call.1} parent=5 // pred_region
        // Predicated region
        $region21: #{tpu_custom_call.1} parent=19 // pred_check
          %p232 = pneg %p53
        $region22: #{tpu_custom_call.1} parent=19 // pred_check_branch
          %234 = sbr.rel (%p232) target = $region24
        $region23: #{tpu_custom_call.1} parent=19 // pred_region
          %s235 = sand.u32 %s43, 1
          %s236 = scalar_lea.sflag [#allocation4], %s235
          %s237 = sand.u32 %s43, 1
          %s238 = smul.addr %s237, 8
          %s239 = scalar_lea.vmem [#allocation3], %s238
          %241 = vsyncadd %s236, 0
          %s242 = smul.addr %s28, 8
          %s243 = scalar_lea.hbm %s0, %s242
          %s245 = sshll.u32 %s243, 4
          %s246 = int_to_ptr.hbm [resolvable:$true] %s245
          %s247 = sshll.u32 %s239, 4
          %s248 = int_to_ptr.vmem [resolvable:$true] %s247
          %250 = dma.hbm_to_vmem [thread:$0]  %s246, 128, %s248, %s236
        $region24: #{tpu_custom_call.1} parent=19 // pred_fallthru
          _
        // Predicated region
        $region25: #{tpu_custom_call.1} parent=19 // pred_check
          %p251 = pneg %p79
        $region26: #{tpu_custom_call.1} parent=19 // pred_check_branch
          %253 = sbr.rel (%p251) target = $region28
        $region27: #{tpu_custom_call.1} parent=19 // pred_region
          %s254 = sand.u32 %s21, 1
          %s255 = scalar_lea.sflag [#allocation7], %s254
          %s256 = sand.u32 %s69, 1
          %s257 = smul.addr %s256, 64
          %s258 = scalar_lea.vmem [#allocation6], %s257
          %260 = vsyncadd %s255, 0
          %s261 = smul.addr %s29, 16
          %s262 = smul.addr %s261, 4
          %s263 = scalar_lea.hbm %s1, %s262
          %s264 = sshll.u32 %s263, 4
          %s265 = int_to_ptr.hbm [resolvable:$true] %s264
          %s266 = sshll.u32 %s258, 4
          %s267 = int_to_ptr.vmem [resolvable:$true] %s266
          %272 = dma.hbm_to_vmem [thread:$0]  %s265, 1024, %s267, %s255, 64, 64, 4
        $region28: #{tpu_custom_call.1} parent=19 // pred_fallthru
          _
        // Predicated region
        $region29: #{tpu_custom_call.1} parent=19 // pred_check
          %p273 = pneg %p105
        $region30: #{tpu_custom_call.1} parent=19 // pred_check_branch
          %275 = sbr.rel (%p273) target = $region32
        $region31: #{tpu_custom_call.1} parent=19 // pred_region
          %p276 = scmp.lt.s32.totalorder %s29, 1
          %s277 = scalar_select %p276, %s29, 1
          %s278 = scalar_lea.vmem %s2, %s277
        $region32: #{tpu_custom_call.1} parent=19 // pred_fallthru
          _
        // Predicated region
        $region33: #{tpu_custom_call.1} parent=19 // pred_check
          %p279 = pneg %p131
        $region34: #{tpu_custom_call.1} parent=19 // pred_check_branch
          %281 = sbr.rel (%p279) target = $region36
        $region35: #{tpu_custom_call.1} parent=19 // pred_region
          %s282 = sand.u32 %s21, 1
          %s283 = scalar_lea.sflag [#allocation7], %s282
          %s284 = sand.u32 %s121, 1
          %s285 = smul.addr %s284, 64
          %s286 = scalar_lea.vmem [#allocation8], %s285
          %288 = vsyncadd %s283, 0
          %s289 = smul.addr %s29, 16
          %s290 = smul.addr %s289, 4
          %s291 = scalar_lea.hbm %s3, %s290
          %s292 = sshll.u32 %s291, 4
          %s293 = int_to_ptr.hbm [resolvable:$true] %s292
          %s294 = sshll.u32 %s286, 4
          %s295 = int_to_ptr.vmem [resolvable:$true] %s294
          %300 = dma.hbm_to_vmem [thread:$0]  %s293, 1024, %s295, %s283, 64, 64, 4
        $region36: #{tpu_custom_call.1} parent=19 // pred_fallthru
          _
        // Predicated region
        $region37: #{tpu_custom_call.1} parent=19 // pred_check
          %p301 = pneg %p157
        $region38: #{tpu_custom_call.1} parent=19 // pred_check_branch
          %303 = sbr.rel (%p301) target = $region40
        $region39: #{tpu_custom_call.1} parent=19 // pred_region
          %p304 = scmp.lt.s32.totalorder %s29, 1
          %s305 = scalar_select %p304, %s29, 1
          %s306 = scalar_lea.vmem %s4, %s305
        $region40: #{tpu_custom_call.1} parent=19 // pred_fallthru
          _
      $region20: #{tpu_custom_call.1} parent=5 // pred_fallthru
        _
      %p307 = scmp.le.s32.totalorder 1, %s21
      %p308 = scmp.lt.s32.totalorder %s21, 5
      %p309 = pnand %p307, %p308
      %p310 = pneg %p309
      // Predicated region
      $region41: #{tpu_custom_call.1} parent=5 // pred_check
        _
      $region42: #{tpu_custom_call.1} parent=5 // pred_check_branch
        %312 = sbr.rel (%p309) target = $region44
      $region43: #{tpu_custom_call.1} parent=5 // pred_region
        %s313 = ssub.s32 %s21, 1
        %s314 = sand.u32 %s46, 1
        %s315 = scalar_lea.sflag [#allocation4], %s314
        %s316 = sand.u32 %s46, 1
        %s317 = smul.addr %s316, 8
        %s318 = scalar_lea.vmem [#allocation3], %s317
        // Predicated region
        $region45: #{tpu_custom_call.1} parent=43 // pred_check
          %p319 = pneg %p59
        $region46: #{tpu_custom_call.1} parent=43 // pred_check_branch
          %321 = sbr.rel (%p319) target = $region48
        $region47: #{tpu_custom_call.1} parent=43 // pred_region
          %323 = dma.done %s315, 128
        $region48: #{tpu_custom_call.1} parent=43 // pred_fallthru
          _
        %s324 = sand.u32 %s26, 1
        %s325 = scalar_lea.sflag [#allocation7], %s324
        %s326 = sand.u32 %s72, 1
        %s327 = smul.addr %s326, 64
        %s328 = scalar_lea.vmem [#allocation6], %s327
        // Predicated region
        $region49: #{tpu_custom_call.1} parent=43 // pred_check
          %p329 = pneg %p85
        $region50: #{tpu_custom_call.1} parent=43 // pred_check_branch
          %331 = sbr.rel (%p329) target = $region52
        $region51: #{tpu_custom_call.1} parent=43 // pred_region
          %333 = dma.done %s325, 1024
        $region52: #{tpu_custom_call.1} parent=43 // pred_fallthru
          _
        %s334 = sand.u32 %s26, 1
        %s335 = scalar_lea.sflag [#allocation7], %s334
        %s336 = sand.u32 %s124, 1
        %s337 = smul.addr %s336, 64
        %s338 = scalar_lea.vmem [#allocation8], %s337
        // Predicated region
        $region53: #{tpu_custom_call.1} parent=43 // pred_check
          %p339 = pneg %p137
        $region54: #{tpu_custom_call.1} parent=43 // pred_check_branch
          %341 = sbr.rel (%p339) target = $region56
        $region55: #{tpu_custom_call.1} parent=43 // pred_region
          %343 = dma.done %s335, 1024
        $region56: #{tpu_custom_call.1} parent=43 // pred_fallthru
          _
        %s344 = sand.u32 %s46, 1
        %s345 = scalar_lea.sflag [#allocation4], %s344
        %s346 = sand.u32 %s46, 1
        %s347 = smul.addr %s346, 8
        %s348 = scalar_lea.vmem [#allocation3], %s347
        %p349 = pneg %p59
        %p350 = pneg %p56
        %s351 = sand.u32 %s26, 1
        %s352 = scalar_lea.sflag [#allocation7], %s351
        %s353 = sand.u32 %s72, 1
        %s354 = smul.addr %s353, 64
        %s355 = scalar_lea.vmem [#allocation6], %s354
        %p356 = pneg %p85
        %p357 = pneg %p82
        %p358 = scmp.lt.s32.totalorder %s31, 1
        %s359 = scalar_select %p358, %s31, 1
        %s360 = scalar_lea.vmem %s2, %s359
        %p361 = pneg %p111
        %p362 = pneg %p108
        %s363 = sand.u32 %s26, 1
        %s364 = scalar_lea.sflag [#allocation7], %s363
        %s365 = sand.u32 %s124, 1
        %s366 = smul.addr %s365, 64
        %s367 = scalar_lea.vmem [#allocation8], %s366
        %p368 = pneg %p137
        %p369 = pneg %p134
        %p370 = scmp.lt.s32.totalorder %s31, 1
        %s371 = scalar_select %p370, %s31, 1
        %s372 = scalar_lea.vmem %s4, %s371
        %p373 = pneg %p163
        %p374 = pneg %p160
        %p375 = pneg %p184
        %p376 = pneg %p181
        %p377 = pneg %p210
        %p378 = pneg %p207
        %s379 = sand.u32 %s197, 1
        %s380 = scalar_lea.sflag [#allocation5], %s379
        %s381 = sand.u32 %s197, 1
        %s382 = smul.addr %s381, 8
        %s383 = scalar_lea.vmem [#allocation9], %s382
        %p384 = scmp.lt.s32.totalorder %s31, 1
        %s385 = scalar_select %p384, %s31, 1
        %s386 = scalar_lea.vmem %s2, %s385
        %p387 = scmp.lt.s32.totalorder %s31, 1
        %s388 = scalar_select %p387, %s31, 1
        %s389 = scalar_lea.vmem %s4, %s388
        %p390 = scmp.eq.s32.totalorder %s31, 0
        // Predicated region
        $region57: #{tpu_custom_call.1} parent=43 // pred_check
          %p391 = pneg %p390
        $region58: #{tpu_custom_call.1} parent=43 // pred_check_branch
          %393 = sbr.rel (%p391) target = $region60
        $region59: #{tpu_custom_call.1} parent=43 // pred_region
          %v394 = vld [vmem:[%s318] sm:$0xff]
          %395 = vst [vmem:[#allocation2] sm:$0xff] %v394
        $region60: #{tpu_custom_call.1} parent=43 // pred_fallthru
          _
        %v396 = vld [vmem:[#allocation2] sm:$0xff]
        %v397 = vmul.f32 %v396, %v396
        %398 = vadd.xlane.f32.xlu0 %v397
        %v399 = vpop.xlane.xlu0 %398
        %v400 = vmul.f32 %v399, 0.03125
        %v401 = vrsqrt.pop %v400
        %v402 = vmul.f32 %v401, %v400
        %v403 = vmul.f32 %v402, %v401
        %v404 = vmul.f32 0.5, %v403
        %v405 = vsub.f32 1.5, %v404
        %v406 = vmul.f32 %v401, %v405
        %v407 = vmul.f32 %v400, %v406
        %vm408 = vcmp.eq.f32.partialorder %v400, inf
        %v409 = vsel %vm408, %v400, %v407
        %vm410 = vcmp.eq.f32.partialorder %v400, 0.0
        %v411 = vand.u32 %v400, 2147483648
        %v412 = vsel %vm410, %v411, %v409
        %v413 = vadd.f32 %v412, 1e-08
        %v414 = vrcp.pop %v413
        %v415 = vmul.f32 %v396, %v414
        %v416 = vpack.c.bf16 %v415, %v415
        %v417 = vld [vmem:[%s328] sm:$0xf]
        %v418 = vld [vmem:[%s328 + $0x4] sm:$0xf]
        %v419 = vld [vmem:[%s328 + $0x8] sm:$0xf]
        %v420 = vld [vmem:[%s328 + $0xc] sm:$0xf]
        %v421 = vld [vmem:[%s328 + $0x10] sm:$0xf]
        %v422 = vld [vmem:[%s328 + $0x14] sm:$0xf]
        %v423 = vld [vmem:[%s328 + $0x18] sm:$0xf]
        %v424 = vld [vmem:[%s328 + $0x1c] sm:$0xf]
        %v425 = vld [vmem:[%s328 + $0x20] sm:$0xf]
        %v426 = vld [vmem:[%s328 + $0x24] sm:$0xf]
        %v427 = vld [vmem:[%s328 + $0x28] sm:$0xf]
        %v428 = vld [vmem:[%s328 + $0x2c] sm:$0xf]
        %v429 = vld [vmem:[%s328 + $0x30] sm:$0xf]
        %v430 = vld [vmem:[%s328 + $0x34] sm:$0xf]
        %v431 = vld [vmem:[%s328 + $0x38] sm:$0xf]
        %v432 = vld [vmem:[%s328 + $0x3c] sm:$0xf]
        %v433 = vld [vmem:[%s386] sm:$0x1]
        %v435 = vperm.slane %v433, 0
        %v453 = vunpack.c.l.b16 %v417
        %v454 = vunpack.c.l.b16 %v418
        %v455 = vunpack.c.l.b16 %v419
        %v456 = vunpack.c.l.b16 %v420
        %v457 = vunpack.c.l.b16 %v421
        %v458 = vunpack.c.l.b16 %v422
        %v459 = vunpack.c.l.b16 %v423
        %v460 = vunpack.c.l.b16 %v424
        %v461 = vunpack.c.l.b16 %v425
        %v462 = vunpack.c.l.b16 %v426
        %v463 = vunpack.c.l.b16 %v427
        %v464 = vunpack.c.l.b16 %v428
        %v465 = vunpack.c.l.b16 %v429
        %v466 = vunpack.c.l.b16 %v430
        %v467 = vunpack.c.l.b16 %v431
        %v468 = vunpack.c.l.b16 %v432
        %v469 = vpack.c.b16 %v454, %v453
        %v470 = vpack.c.b16 %v456, %v455
        %v471 = vpack.c.b16 %v458, %v457
        %v472 = vpack.c.b16 %v460, %v459
        %v473 = vpack.c.b16 %v462, %v461
        %v474 = vpack.c.b16 %v464, %v463
        %v475 = vpack.c.b16 %v466, %v465
        %v476 = vpack.c.b16 %v468, %v467
        %485 = vmatpush.bf16.msra.mxu0 %v476
        %486 = vmatpush.bf16.msra.mxu0 %v475
        %487 = vmatpush.bf16.msra.mxu0 %v474
        %488 = vmatpush.bf16.msra.mxu0 %v473
        %489 = vmatpush.bf16.msra.mxu0 %v472
        %490 = vmatpush.bf16.msra.mxu0 %v471
        %491 = vmatpush.bf16.msra.mxu0 %v470
        %492 = vmatpush.bf16.msra.mxu0 %v469
        %493 = vmatmul.bf16.gmra.mxu0 %v416
        %v494 = vpop.f32.mrf.mxu0
        %v495 = vadd.f32 %v435, %v494
        %v496 = vpop.f32.mrf.mxu0
        %497 = vdwg.mxu0
        %v498 = vmul.f32 %v495, 0.5
        %v499 = vmul.f32 %v495, 0.044715
        %v500 = vmul.f32 %v499, %v495
        %v501 = vmul.f32 %v500, %v495
        %v502 = vadd.f32 %v495, %v501
        %v503 = vmul.f32 %v502, 0.7978846
        %v504 = vtanh.pop %v503
        %v505 = vadd.f32 %v504, 1.0
        %v506 = vmul.f32 %v498, %v505
        %v507 = vpack.c.bf16 %v506, %v506
        %v508 = vld [vmem:[%s338] sm:$0xf]
        %v509 = vld [vmem:[%s338 + $0x4] sm:$0xf]
        %v510 = vld [vmem:[%s338 + $0x8] sm:$0xf]
        %v511 = vld [vmem:[%s338 + $0xc] sm:$0xf]
        %v512 = vld [vmem:[%s338 + $0x10] sm:$0xf]
        %v513 = vld [vmem:[%s338 + $0x14] sm:$0xf]
        %v514 = vld [vmem:[%s338 + $0x18] sm:$0xf]
        %v515 = vld [vmem:[%s338 + $0x1c] sm:$0xf]
        %v516 = vld [vmem:[%s338 + $0x20] sm:$0xf]
        %v517 = vld [vmem:[%s338 + $0x24] sm:$0xf]
        %v518 = vld [vmem:[%s338 + $0x28] sm:$0xf]
        %v519 = vld [vmem:[%s338 + $0x2c] sm:$0xf]
        %v520 = vld [vmem:[%s338 + $0x30] sm:$0xf]
        %v521 = vld [vmem:[%s338 + $0x34] sm:$0xf]
        %v522 = vld [vmem:[%s338 + $0x38] sm:$0xf]
        %v523 = vld [vmem:[%s338 + $0x3c] sm:$0xf]
        %v524 = vld [vmem:[%s389] sm:$0x1]
        %v526 = vperm.slane %v524, 0
        %v544 = vunpack.c.l.b16 %v508
        %v545 = vunpack.c.l.b16 %v509
        %v546 = vunpack.c.l.b16 %v510
        %v547 = vunpack.c.l.b16 %v511
        %v548 = vunpack.c.l.b16 %v512
        %v549 = vunpack.c.l.b16 %v513
        %v550 = vunpack.c.l.b16 %v514
        %v551 = vunpack.c.l.b16 %v515
        %v552 = vunpack.c.l.b16 %v516
        %v553 = vunpack.c.l.b16 %v517
        %v554 = vunpack.c.l.b16 %v518
        %v555 = vunpack.c.l.b16 %v519
        %v556 = vunpack.c.l.b16 %v520
        %v557 = vunpack.c.l.b16 %v521
        %v558 = vunpack.c.l.b16 %v522
        %v559 = vunpack.c.l.b16 %v523
        %v560 = vpack.c.b16 %v545, %v544
        %v561 = vpack.c.b16 %v547, %v546
        %v562 = vpack.c.b16 %v549, %v548
        %v563 = vpack.c.b16 %v551, %v550
        %v564 = vpack.c.b16 %v553, %v552
        %v565 = vpack.c.b16 %v555, %v554
        %v566 = vpack.c.b16 %v557, %v556
        %v567 = vpack.c.b16 %v559, %v558
        %576 = vmatpush.bf16.msra.mxu0 %v567
        %577 = vmatpush.bf16.msra.mxu0 %v566
        %578 = vmatpush.bf16.msra.mxu0 %v565
        %579 = vmatpush.bf16.msra.mxu0 %v564
        %580 = vmatpush.bf16.msra.mxu0 %v563
        %581 = vmatpush.bf16.msra.mxu0 %v562
        %582 = vmatpush.bf16.msra.mxu0 %v561
        %583 = vmatpush.bf16.msra.mxu0 %v560
        %584 = vmatmul.bf16.gmra.mxu0 %v507
        %v585 = vpop.f32.mrf.mxu0
        %v586 = vadd.f32 %v526, %v585
        %v587 = vpop.f32.mrf.mxu0
        %588 = vdwg.mxu0
        %v589 = vadd.f32 %v396, %v586
        %590 = vst [vmem:[#allocation2] sm:$0xff] %v589
        %p591 = scmp.eq.s32.totalorder %s31, 1
        // Predicated region
        $region61: #{tpu_custom_call.1} parent=43 // pred_check
          %p592 = pneg %p591
        $region62: #{tpu_custom_call.1} parent=43 // pred_check_branch
          %594 = sbr.rel (%p592) target = $region64
        $region63: #{tpu_custom_call.1} parent=43 // pred_region
          %v595 = vld [vmem:[%s5] sm:$0x1]
          %v597 = vperm.slane %v595, 0
          %v599 = vmul.f32 %v597, %v589
          %v600 = vmul.f32 %v589, %v589
          %601 = vadd.xlane.f32.xlu0 %v600
          %v602 = vpop.xlane.xlu0 %601
          %v603 = vmul.f32 %v602, 0.03125
          %v604 = vrsqrt.pop %v603
          %v605 = vmul.f32 %v604, %v603
          %v606 = vmul.f32 %v605, %v604
          %v607 = vmul.f32 0.5, %v606
          %v608 = vsub.f32 1.5, %v607
          %v609 = vmul.f32 %v604, %v608
          %v610 = vmul.f32 %v603, %v609
          %vm611 = vcmp.eq.f32.partialorder %v603, inf
          %v612 = vsel %vm611, %v603, %v610
          %vm613 = vcmp.eq.f32.partialorder %v603, 0.0
          %v614 = vand.u32 %v603, 2147483648
          %v615 = vsel %vm613, %v614, %v612
          %v616 = vadd.f32 %v615, 1e-08
          %v617 = vrcp.pop %v616
          %v618 = vmul.f32 %v599, %v617
          %619 = vst [vmem:[%s383] sm:$0xff] %v618
        $region64: #{tpu_custom_call.1} parent=43 // pred_fallthru
          _
        %s620 = sand.u32 %s197, 1
        %s621 = scalar_lea.sflag [#allocation5], %s620
        %s622 = sand.u32 %s197, 1
        %s623 = smul.addr %s622, 8
        %s624 = scalar_lea.vmem [#allocation9], %s623
        // Predicated region
        $region65: #{tpu_custom_call.1} parent=43 // pred_check
          %p625 = pneg %p207
        $region66: #{tpu_custom_call.1} parent=43 // pred_check_branch
          %627 = sbr.rel (%p625) target = $region68
        $region67: #{tpu_custom_call.1} parent=43 // pred_region
          %629 = vsyncadd %s621, 0
          %s630 = smul.addr %s30, 8
          %s631 = scalar_lea.hbm %s6, %s630
          %s633 = sshll.u32 %s624, 4
          %s634 = int_to_ptr.vmem [resolvable:$true] %s633
          %s635 = sshll.u32 %s631, 4
          %s636 = int_to_ptr.hbm [resolvable:$true] %s635
          %638 = dma.vmem_to_hbm [thread:$0]  %s634, 128, %s636, %s621
        $region68: #{tpu_custom_call.1} parent=43 // pred_fallthru
          _
      $region44: #{tpu_custom_call.1} parent=5 // pred_fallthru
        _
      %p639 = scmp.le.s32.totalorder 2, %s21
      // Predicated region
      $region69: #{tpu_custom_call.1} parent=5 // pred_check
        %p640 = pneg %p639
      $region70: #{tpu_custom_call.1} parent=5 // pred_check_branch
        %642 = sbr.rel (%p640) target = $region72
      $region71: #{tpu_custom_call.1} parent=5 // pred_region
        %s643 = ssub.s32 %s21, 2
        // Predicated region
        $region73: #{tpu_custom_call.1} parent=71 // pred_check
          %p644 = pneg %p213
        $region74: #{tpu_custom_call.1} parent=71 // pred_check_branch
          %646 = sbr.rel (%p644) target = $region76
        $region75: #{tpu_custom_call.1} parent=71 // pred_region
          %s647 = sand.u32 %s198, 1
          %s648 = scalar_lea.sflag [#allocation5], %s647
          %s649 = sand.u32 %s198, 1
          %s650 = smul.addr %s649, 8
          %s651 = scalar_lea.vmem [#allocation9], %s650
          %653 = dma.done %s648, 128
        $region76: #{tpu_custom_call.1} parent=71 // pred_fallthru
          _
      $region72: #{tpu_custom_call.1} parent=5 // pred_fallthru
        _
    $region6: #{tpu_custom_call.1} parent=1 // loop_footer
      %s25 = sadd.s32 1, %s21
    $region7: #{tpu_custom_call.1} parent=1 // loop_footer_branch
      %20 = sbr.rel target = $region3
    $region8: #{tpu_custom_call.1} parent=1 // loop_exit
      _
    %654 = vsyncpa [#allocation4], 1
    %s655 = scalar_lea.sflag [#allocation4], 1
    %656 = vsyncpa %s655, 1
    %657 = vsyncpa [#allocation7], 1
    %s658 = scalar_lea.sflag [#allocation7], 1
    %659 = vsyncpa %s658, 1
    %660 = vsyncpa [#allocation5], 1
    %s661 = scalar_lea.sflag [#allocation5], 1
    %662 = vsyncpa %s661, 1

</llo_original>
